<compile_context>
chip_gen: v5e
topology: v5e:2x2
jax: 0.10.0
libtpu: 0.0.40
codegen_flags: <defaults>
</compile_context>

<pallas_src>
import jax
import jax.numpy as jnp
from jax.experimental import pallas as pl
from jax.experimental.pallas import tpu as pltpu


def _round_up(x, m):
    return (x + m - 1) // m * m


# ---------------------------------------------------------------------------
# Kernels
# ---------------------------------------------------------------------------

def _vae_labels_kernel(x_ref,    # VMEM (TB, X)      f32
                       w1_ref,   # VMEM (X, H)       f32  (resident)
                       b1_ref,   # VMEM (1, H)       f32  (resident)
                       w2_ref,   # VMEM (H, 2*Zp)    f32  [w21 | w22] lane-padded
                       b2_ref,   # VMEM (1, 2*Zp)    f32  [b21 | b22] lane-padded
                       eps_ref,  # VMEM (TB, Z)      f32  (randn * n, pipelined)
                       z_ref):   # VMEM (TB, Z)
    """Stochastic path: z = mu + eps * exp(0.5 * log_var); eps pre-scaled by n."""
    zdim = z_ref.shape[-1]
    zp = w2_ref.shape[-1] // 2

    h = jnp.dot(x_ref[...], w1_ref[...],
                preferred_element_type=jnp.float32) + b1_ref[...]
    h = jnp.maximum(h, 0.0)

    # Fused head: one matmul produces [mu | log_var] (each Zp=128 lanes wide).
    y = jnp.dot(h, w2_ref[...],
                preferred_element_type=jnp.float32) + b2_ref[...]
    mu = y[:, :zdim]                    # lane offset 0      (vreg-aligned)
    log_var = y[:, zp:zp + zdim]        # lane offset Zp=128 (vreg-aligned)

    std = jnp.exp(0.5 * log_var)
    z_ref[...] = (mu + eps_ref[...] * std).astype(z_ref.dtype)


def _vae_labels_kernel_det(x_ref, w1_ref, b1_ref, w2_ref, b2_ref, z_ref):
    """Deterministic (n == 0) path: z == mu; skips noise and exp entirely."""
    zdim = z_ref.shape[-1]
    h = jnp.dot(x_ref[...], w1_ref[...],
                preferred_element_type=jnp.float32) + b1_ref[...]
    h = jnp.maximum(h, 0.0)
    y = jnp.dot(h, w2_ref[...],
                preferred_element_type=jnp.float32) + b2_ref[...]
    z_ref[...] = y[:, :zdim].astype(z_ref.dtype)


# ---------------------------------------------------------------------------
# Host-side packing + wrapper
# ---------------------------------------------------------------------------

def pack_params(params):
    """One-time weight packing (hoisted out of the per-call path).

    fc1 stays [X, H]; fc21 / fc22 are fused and lane-padded into [H, 2*Zp]
    (Zp = round_up(Z, 128)) so the mu / log_var slices in the kernel start on
    vreg lane boundaries."""
    X, H = params["w1"].shape
    Z = params["w21"].shape[1]
    Zp = _round_up(Z, 128)

    w1 = params["w1"].astype(jnp.float32)
    b1 = params["b1"].reshape(1, H).astype(jnp.float32)
    w2 = jnp.zeros((H, 2 * Zp), jnp.float32)
    w2 = w2.at[:, :Z].set(params["w21"].astype(jnp.float32))
    w2 = w2.at[:, Zp:Zp + Z].set(params["w22"].astype(jnp.float32))
    b2 = jnp.zeros((1, 2 * Zp), jnp.float32)
    b2 = b2.at[:, :Z].set(params["b21"].reshape(1, Z).astype(jnp.float32))
    b2 = b2.at[:, Zp:Zp + Z].set(params["b22"].reshape(1, Z).astype(jnp.float32))
    return {"w1": w1, "b1": b1, "w2": w2, "b2": b2, "dims": (X, H, Z, Zp)}


def vae_shape_labels_forward(x_labels, packed, n, key=None, *, tb=8192,
                             out_dtype=jnp.float32):
    """x_labels: [B, X] f32.  Returns z: [B, Z].

    n == 0 (or key is None) -> deterministic path (z == mu).  For the
    stochastic path a fresh `key` must be supplied per call (torch.randn_like
    draws fresh noise on every forward)."""
    x = jnp.asarray(x_labels, jnp.float32)
    B, X = x.shape
    Xp, H, Z, Zp = packed["dims"]
    assert X == Xp, f"x_labels feature dim {X} != packed dim {Xp}"

    deterministic = key is None or (isinstance(n, (int, float)) and n == 0)

    # Batch tiling: biggest tile up to `tb` (multiple of 8 sublanes), capped at
    # ceil(B/2) so there are >=2 grid steps for v7x's two TensorCores.
    B8 = _round_up(B, 8)
    tb_cap = max(8, _round_up(pl.cdiv(B8, 2), 8))
    TB = max(8, min(_round_up(tb, 8), tb_cap))
    B_pad = _round_up(B, TB)
    grid = (B_pad // TB,)
    # VMEM @ TB=8192, Zp=128: 2x x-tile (0.5 MiB) + 2x eps (1 MiB) + 2x z (1 MiB)
    # + y temp [TB, 2*Zp] f32 (8 MiB) + h -- well under the 32 MiB default
    # scoped limit.  Re-derive before pushing TB toward 16K+ rows on v7x (64 MiB).

    if B_pad != B:
        x = jnp.pad(x, ((0, B_pad - B), (0, 0)))

    row_spec_x = pl.BlockSpec((TB, X), lambda i: (i, 0))
    row_spec_z = pl.BlockSpec((TB, Z), lambda i: (i, 0))

    def resident(shape):
        return pl.BlockSpec(shape, lambda i: (0, 0))

    in_specs = [
        row_spec_x,               # x tile      (pipelined)
        resident((X, H)),         # w1          (VMEM-resident)
        resident((1, H)),         # b1
        resident((H, 2 * Zp)),    # fused [w21 | w22]
        resident((1, 2 * Zp)),    # fused [b21 | b22]
    ]
    operands = [x, packed["w1"], packed["b1"], packed["w2"], packed["b2"]]

    if deterministic:
        kernel = _vae_labels_kernel_det
        transcendentals = 0
        eps_bytes = 0
    else:
        kernel = _vae_labels_kernel
        eps = jax.random.normal(key, (B, Z), jnp.float32) * jnp.float32(n)
        if B_pad != B:
            eps = jnp.pad(eps, ((0, B_pad - B), (0, 0)))
        in_specs.append(row_spec_z)   # eps tile (pipelined alongside x)
        operands.append(eps)
        transcendentals = B_pad * Z   # exp(0.5 * log_var)
        eps_bytes = B_pad * Z * 4

    cost = pl.CostEstimate(
        flops=2 * B_pad * (X * H + H * 2 * Zp),
        transcendentals=transcendentals,
        bytes_accessed=(B_pad * X * 4 + eps_bytes
                        + B_pad * Z * jnp.dtype(out_dtype).itemsize
                        + packed["w1"].size * 4 + packed["w2"].size * 4
                        + packed["b1"].size * 4 + packed["b2"].size * 4),
    )

    z_pad = pl.pallas_call(
        kernel,
        out_shape=jax.ShapeDtypeStruct((B_pad, Z), out_dtype),
        grid=grid,
        in_specs=in_specs,
        out_specs=row_spec_z,
        compiler_params=pltpu.CompilerParams(
            dimension_semantics=("parallel",)),
        cost_estimate=cost,
    )(*operands)

    return z_pad if B_pad == B else z_pad[:B]


# ---------------------------------------------------------------------------
# Reference + init
# ---------------------------------------------------------------------------

def init_params(key, xlabel_dim, hlabel_dim, zlabel_dim):
    """nn.Linear-style U(-1/sqrt(fan_in), 1/sqrt(fan_in)); weights stored [in, out]."""
    ks = jax.random.split(key, 6)

    def lin(kw, kb, fan_in, fan_out):
        bound = 1.0 / jnp.sqrt(fan_in)
        w = jax.random.uniform(kw, (fan_in, fan_out), jnp.float32, -bound, bound)
        b = jax.random.uniform(kb, (1, fan_out), jnp.float32, -bound, bound)
        return w, b

    w1, b1 = lin(ks[0], ks[1], xlabel_dim, hlabel_dim)
    w21, b21 = lin(ks[2], ks[3], hlabel_dim, zlabel_dim)
    w22, b22 = lin(ks[4], ks[5], hlabel_dim, zlabel_dim)
    return {"w1": w1, "b1": b1, "w21": w21, "b21": b21, "w22": w22, "b22": b22}


def reference_mu_logvar(x, params):
    """Pure-JAX f32 reference of the deterministic path."""
    h = jnp.maximum(x @ params["w1"] + params["b1"], 0.0)
    mu = h @ params["w21"] + params["b21"]
    log_var = h @ params["w22"] + params["b22"]
    return mu, log_var


# ---------------------------------------------------------------------------
# Self-test
# ---------------------------------------------------------------------------

if __name__ == "__main__":
    # Small shapes consistent with the module: labels -> hidden -> latent.
    B, X, H, Z = 2, 8, 32, 16

    key = jax.random.PRNGKey(0)
    k_param, k_x, k_eps = jax.random.split(key, 3)

    params = init_params(k_param, X, H, Z)
    packed = pack_params(params)          # packed once, reused every forward
    x_labels = jax.random.uniform(k_x, (B, X), jnp.float32)

    mu_ref, log_var_ref = reference_mu_logvar(x_labels, params)
    std_ref = jnp.exp(0.5 * log_var_ref)

    # n = 0: reparameterization collapses to z == mu (deterministic check of
    # the full matmul / bias / relu / fused-head path).
    z0 = jax.block_until_ready(vae_shape_labels_forward(x_labels, packed, n=0.0))
    assert z0.shape == (B, Z)
    assert jnp.allclose(z0, mu_ref, atol=2e-2, rtol=2e-2), "z(n=0) != mu"

    # n = 1: stochastic path; eps is reproducible from the key, so the
    # expected z is known exactly.
    n = 1.0
    z1 = jax.block_until_ready(
        vae_shape_labels_forward(x_labels, packed, n=n, key=k_eps))
    assert z1.shape == (B, Z)
    eps = jax.random.normal(k_eps, (B, Z), jnp.float32) * n
    z1_expected = mu_ref + eps * std_ref
    assert bool(jnp.all(jnp.isfinite(z1))), "non-finite z"
    assert jnp.allclose(z1, z1_expected, atol=2e-2, rtol=2e-2), "stochastic z mismatch"

    print("KERNEL_OK")
</pallas_src>

<mosaic_0001>
module attributes {stable_mosaic.version = 11 : i64} {
  func.func @_vae_labels_kernel_det(%arg0: i32, %arg1: memref<8x8xf32, #tpu.memory_space<vmem>>, %arg2: memref<8x32xf32, #tpu.memory_space<vmem>>, %arg3: memref<1x32xf32, #tpu.memory_space<vmem>>, %arg4: memref<32x256xf32, #tpu.memory_space<vmem>>, %arg5: memref<1x256xf32, #tpu.memory_space<vmem>>, %arg6: memref<8x16xf32, #tpu.memory_space<vmem>>) attributes {dimension_semantics = [#tpu.dimension_semantics<parallel>], iteration_bounds = array<i64: 1>, scalar_prefetch = 0 : i64, scratch_operands = 0 : i64, tpu.core_type = #tpu.core_type<tc>, window_params = [{transform_indices = @transform_0, window_bounds = array<i64: 8, 8>}, {pipeline_mode = #tpu.pipeline_mode<synchronous>, transform_indices = @transform_1, window_bounds = array<i64: 8, 32>}, {pipeline_mode = #tpu.pipeline_mode<synchronous>, transform_indices = @transform_2, window_bounds = array<i64: 1, 32>}, {pipeline_mode = #tpu.pipeline_mode<synchronous>, transform_indices = @transform_3, window_bounds = array<i64: 32, 256>}, {pipeline_mode = #tpu.pipeline_mode<synchronous>, transform_indices = @transform_4, window_bounds = array<i64: 1, 256>}, {transform_indices = @transform_5, window_bounds = array<i64: 8, 16>}]} {
    %c0 = arith.constant 0 : index
    %c0_0 = arith.constant 0 : index
    %0 = vector.load %arg1[%c0, %c0_0] : memref<8x8xf32, #tpu.memory_space<vmem>>, vector<8x8xf32>
    %c0_1 = arith.constant 0 : index
    %c0_2 = arith.constant 0 : index
    %1 = vector.load %arg2[%c0_1, %c0_2] : memref<8x32xf32, #tpu.memory_space<vmem>>, vector<8x32xf32>
    %cst = arith.constant dense<0.000000e+00> : vector<8x32xf32>
    %2 = tpu.matmul %0, %1, %cst {dimension_numbers = #tpu.dot_dimension_numbers<[1], [0], [0], [1], [0, 0, 1, 1], [], []>} : vector<8x8xf32>, vector<8x32xf32>, vector<8x32xf32> -> vector<8x32xf32>
    %c0_3 = arith.constant 0 : index
    %c0_4 = arith.constant 0 : index
    %3 = vector.load %arg3[%c0_3, %c0_4] : memref<1x32xf32, #tpu.memory_space<vmem>>, vector<1x32xf32>
    %4 = vector.broadcast %3 : vector<1x32xf32> to vector<8x32xf32>
    %5 = arith.addf %2, %4 : vector<8x32xf32>
    %cst_5 = arith.constant 0.000000e+00 : f32
    %6 = vector.broadcast %cst_5 : f32 to vector<8x32xf32>
    %7 = arith.maximumf %5, %6 : vector<8x32xf32>
    %c0_6 = arith.constant 0 : index
    %c0_7 = arith.constant 0 : index
    %8 = vector.load %arg4[%c0_6, %c0_7] : memref<32x256xf32, #tpu.memory_space<vmem>>, vector<32x256xf32>
    %cst_8 = arith.constant dense<0.000000e+00> : vector<8x256xf32>
    %9 = tpu.matmul %7, %8, %cst_8 {dimension_numbers = #tpu.dot_dimension_numbers<[1], [0], [0], [1], [0, 0, 1, 1], [], []>} : vector<8x32xf32>, vector<32x256xf32>, vector<8x256xf32> -> vector<8x256xf32>
    %c0_9 = arith.constant 0 : index
    %c0_10 = arith.constant 0 : index
    %10 = vector.load %arg5[%c0_9, %c0_10] : memref<1x256xf32, #tpu.memory_space<vmem>>, vector<1x256xf32>
    %11 = vector.broadcast %10 : vector<1x256xf32> to vector<8x256xf32>
    %12 = arith.addf %9, %11 : vector<8x256xf32>
    %13 = vector.extract_strided_slice %12 {offsets = [0, 0], sizes = [8, 16], strides = [1, 1]} : vector<8x256xf32> to vector<8x16xf32>
    %c0_11 = arith.constant 0 : index
    %c0_12 = arith.constant 0 : index
    %14 = vector.load %arg6[%c0_11, %c0_12] : memref<8x16xf32, #tpu.memory_space<vmem>>, vector<8x16xf32>
    tpu.vector_store %arg6[%c0_11, %c0_12], %13 {strides = array<i32>} : memref<8x16xf32, #tpu.memory_space<vmem>>, vector<8x16xf32>,
    return
  }
  func.func @transform_0(%arg0: i32) -> (i32, i32) {
    %c0_i32 = arith.constant 0 : i32
    %c0_i32_0 = arith.constant 0 : i32
    return %arg0, %c0_i32 : i32, i32
  }
  func.func @transform_1(%arg0: i32) -> (i32, i32) {
    %c0_i32 = arith.constant 0 : i32
    %c0_i32_0 = arith.constant 0 : i32
    %c0_i32_1 = arith.constant 0 : i32
    return %c0_i32, %c0_i32_0 : i32, i32
  }
  func.func @transform_2(%arg0: i32) -> (i32, i32) {
    %c0_i32 = arith.constant 0 : i32
    %c0_i32_0 = arith.constant 0 : i32
    %c0_i32_1 = arith.constant 0 : i32
    return %c0_i32, %c0_i32_0 : i32, i32
  }
  func.func @transform_3(%arg0: i32) -> (i32, i32) {
    %c0_i32 = arith.constant 0 : i32
    %c0_i32_0 = arith.constant 0 : i32
    %c0_i32_1 = arith.constant 0 : i32
    return %c0_i32, %c0_i32_0 : i32, i32
  }
  func.func @transform_4(%arg0: i32) -> (i32, i32) {
    %c0_i32 = arith.constant 0 : i32
    %c0_i32_0 = arith.constant 0 : i32
    %c0_i32_1 = arith.constant 0 : i32
    return %c0_i32, %c0_i32_0 : i32, i32
  }
  func.func @transform_5(%arg0: i32) -> (i32, i32) {
    %c0_i32 = arith.constant 0 : i32
    %c0_i32_0 = arith.constant 0 : i32
    return %arg0, %c0_i32 : i32, i32
  }
}

</mosaic_0001>

<llo_original>
// kernel: tpu_custom_call.1
$region0: #{tpu_custom_call.1}
  #allocation0 [shape = 'u32[]', space=smem, size = 0x4, offset = 0x4, fixed_abs, tag = 'smem constant byte address 0x4 - core index']
  #allocation1 [shape = 'u32[72,128]{1,0:T(1,128)}', space=vmem, size = 0x9000, scoped, tag = 'internal scratch']
  %s0 = inlined_call_operand.hbm [shape: f32[8,8], index: 0, kind: input, shape index: {}]
  %s1 = inlined_call_operand.hbm [shape: f32[8,32], index: 1, kind: input, shape index: {}]
  %s2 = inlined_call_operand.vmem [shape: f32[1,32], index: 2, kind: input, shape index: {}]
  %s3 = inlined_call_operand.hbm [shape: f32[32,256], index: 3, kind: input, shape index: {}]
  %s4 = inlined_call_operand.vmem [shape: f32[1,256], index: 4, kind: input, shape index: {}]
  %s5 = inlined_call_operand.hbm [shape: f32[8,16], index: 5, kind: output, shape index: {}]
  %s6 = sld [smem:[#allocation0]]
  $region42: #{tpu_custom_call.1} parent=0
    _
  %s8 = ssub.s32 1, %s6
  %s9 = scalar_select 0, %s8, %s6
  $region1: #{tpu_custom_call.1} parent=0
    #allocation2 [shape = 'u8[4096]{0}', space=vmem, size = 0x1000, scoped, tag = 'input window, operand 0, single buffered']
    #allocation3 [shape = 's32[1]{0}', space=sflag, size = 0x4, scoped, tag = 'scoped memory for tpu_custom_call.1']
    #allocation4 [shape = 's32[1]{0}', space=sflag, size = 0x4, scoped, tag = 'scoped memory for tpu_custom_call.1']
    #allocation5 [shape = 'u8[4096]{0}', space=vmem, size = 0x1000, scoped, tag = 'input window, operand 1, single buffered']
    #allocation6 [shape = 's32[1]{0}', space=sflag, size = 0x4, scoped, tag = 'scoped memory for tpu_custom_call.1']
    #allocation7 [shape = 'u8[32768]{0}', space=vmem, size = 0x8000, scoped, tag = 'input window, operand 3, single buffered']
    #allocation8 [shape = 'u8[4096]{0}', space=vmem, size = 0x1000, scoped, tag = 'output window, operand 0, single buffered']
    %10 = vsyncpa [#allocation3], 0
    %11 = vsyncpa [#allocation6], 0
    %12 = vsyncpa [#allocation4], 0
    // Predicated region
    $region2: #{tpu_custom_call.1} parent=1 // pred_check
      _
    $region3: #{tpu_custom_call.1} parent=1 // pred_check_branch
      %14 = sbr.rel (0) target = $region5
    $region4: #{tpu_custom_call.1} parent=1 // pred_region
      %16 = vsyncadd [#allocation3], 0
      %s18 = sshll.u32 %s0, 4
      %s19 = int_to_ptr.hbm [resolvable:$true] %s18
      %s20 = sshll.u32 [#allocation2], 4
      %s21 = int_to_ptr.vmem [resolvable:$true] %s20
      %23 = dma.hbm_to_vmem [thread:$0]  %s19, 128, %s21, [#allocation3]
    $region5: #{tpu_custom_call.1} parent=1 // pred_fallthru
      _
    // Predicated region
    $region6: #{tpu_custom_call.1} parent=1 // pred_check
      _
    $region7: #{tpu_custom_call.1} parent=1 // pred_check_branch
      %25 = sbr.rel (0) target = $region9
    $region8: #{tpu_custom_call.1} parent=1 // pred_region
      %27 = vsyncadd [#allocation6], 0
      %s29 = sshll.u32 %s1, 4
      %s30 = int_to_ptr.hbm [resolvable:$true] %s29
      %s31 = sshll.u32 [#allocation5], 4
      %s32 = int_to_ptr.vmem [resolvable:$true] %s31
      %34 = dma.hbm_to_vmem [thread:$0]  %s30, 128, %s32, [#allocation6]
    $region9: #{tpu_custom_call.1} parent=1 // pred_fallthru
      _
    // Predicated region
    $region10: #{tpu_custom_call.1} parent=1 // pred_check
      _
    $region11: #{tpu_custom_call.1} parent=1 // pred_check_branch
      %36 = sbr.rel (0) target = $region13
    $region12: #{tpu_custom_call.1} parent=1 // pred_region
      _
    $region13: #{tpu_custom_call.1} parent=1 // pred_fallthru
      _
    // Predicated region
    $region14: #{tpu_custom_call.1} parent=1 // pred_check
      _
    $region15: #{tpu_custom_call.1} parent=1 // pred_check_branch
      %38 = sbr.rel (0) target = $region17
    $region16: #{tpu_custom_call.1} parent=1 // pred_region
      %40 = vsyncadd [#allocation6], 0
      %s41 = sshll.u32 %s3, 4
      %s42 = int_to_ptr.hbm [resolvable:$true] %s41
      %s43 = sshll.u32 [#allocation7], 4
      %s44 = int_to_ptr.vmem [resolvable:$true] %s43
      %49 = dma.hbm_to_vmem [thread:$0]  %s42, 1024, %s44, [#allocation6], 256, 256, 16
    $region17: #{tpu_custom_call.1} parent=1 // pred_fallthru
      _
    // Predicated region
    $region18: #{tpu_custom_call.1} parent=1 // pred_check
      _
    $region19: #{tpu_custom_call.1} parent=1 // pred_check_branch
      %51 = sbr.rel (0) target = $region21
    $region20: #{tpu_custom_call.1} parent=1 // pred_region
      _
    $region21: #{tpu_custom_call.1} parent=1 // pred_fallthru
      _
    // Predicated region
    $region22: #{tpu_custom_call.1} parent=1 // pred_check
      _
    $region23: #{tpu_custom_call.1} parent=1 // pred_check_branch
      %53 = sbr.rel (0) target = $region25
    $region24: #{tpu_custom_call.1} parent=1 // pred_region
      %55 = dma.done [#allocation3], 128
    $region25: #{tpu_custom_call.1} parent=1 // pred_fallthru
      _
    // Predicated region
    $region26: #{tpu_custom_call.1} parent=1 // pred_check
      _
    $region27: #{tpu_custom_call.1} parent=1 // pred_check_branch
      %57 = sbr.rel (0) target = $region29
    $region28: #{tpu_custom_call.1} parent=1 // pred_region
      %59 = dma.done [#allocation6], 128
    $region29: #{tpu_custom_call.1} parent=1 // pred_fallthru
      _
    // Predicated region
    $region30: #{tpu_custom_call.1} parent=1 // pred_check
      _
    $region31: #{tpu_custom_call.1} parent=1 // pred_check_branch
      %61 = sbr.rel (0) target = $region33
    $region32: #{tpu_custom_call.1} parent=1 // pred_region
      %63 = dma.done [#allocation6], 1024
    $region33: #{tpu_custom_call.1} parent=1 // pred_fallthru
      _
    %v64 = vld [vmem:[#allocation2] sm:$0xff]
    %v65 = vld [vmem:[#allocation5] sm:$0xff]
    %v66 = vld [vmem:[%s2] sm:$0x1]
    %v68 = vperm.slane %v66, 0
    %vm70 = vcmask 64512
    %v72 = vsel %vm70, %v64, 0
    %74 = vmatpush.msra.mxu0 0.0
    %75 = vmatpush.msra.mxu0 0.0
    %76 = vmatpush.msra.mxu0 0.0
    %77 = vmatpush.msra.mxu0 0.0
    %78 = vmatpush.msra.mxu0 0.0
    %79 = vmatpush.msra.mxu0 0.0
    %80 = vmatpush.msra.mxu0 0.0
    %81 = vmatpush.msra.mxu0 0.0
    %82 = vmatpush.msra.mxu0 0.0
    %83 = vmatpush.msra.mxu0 0.0
    %84 = vmatpush.msra.mxu0 0.0
    %85 = vmatpush.msra.mxu0 0.0
    %86 = vmatpush.msra.mxu0 0.0
    %87 = vmatpush.msra.mxu0 0.0
    %88 = vmatpush.msra.mxu0 0.0
    %89 = vmatpush.msra.mxu0 %v65
    %90 = vmatmul.f32.gmra.mxu0 %v72
    %v91 = vpop.f32.mrf.mxu0
    %v92 = vadd.f32 %v68, %v91
    %93 = vdwg.mxu0
    %v94 = vmax.f32 %v92, 0.0
    %v95 = vld [vmem:[#allocation7] sm:$0xff]
    %v96 = vld [vmem:[#allocation7 + $0x10] sm:$0xff]
    %v97 = vld [vmem:[#allocation7 + $0x20] sm:$0xff]
    %v98 = vld [vmem:[#allocation7 + $0x30] sm:$0xff]
    %v99 = vld [vmem:[%s4] sm:$0x3]
    %v101 = vperm.slane %v99, 0
    %vm103 = vcmask 261120
    %v105 = vsel %vm103, %v94, 0
    %107 = vmatpush.msra.mxu0 0.0
    %108 = vmatpush.msra.mxu0 0.0
    %109 = vmatpush.msra.mxu0 0.0
    %110 = vmatpush.msra.mxu0 0.0
    %111 = vmatpush.msra.mxu0 0.0
    %112 = vmatpush.msra.mxu0 0.0
    %113 = vmatpush.msra.mxu0 0.0
    %114 = vmatpush.msra.mxu0 0.0
    %115 = vmatpush.msra.mxu0 0.0
    %116 = vmatpush.msra.mxu0 0.0
    %117 = vmatpush.msra.mxu0 0.0
    %118 = vmatpush.msra.mxu0 0.0
    %119 = vmatpush.msra.mxu0 %v98
    %120 = vmatpush.msra.mxu0 %v97
    %121 = vmatpush.msra.mxu0 %v96
    %122 = vmatpush.msra.mxu0 %v95
    %123 = vmatmul.f32.gmra.mxu0 %v105
    %v124 = vpop.f32.mrf.mxu0
    %v125 = vadd.f32 %v101, %v124
    %126 = vdwg.mxu0
    %vm127 = vcmask 130048
    %128 = vst.msk [vmem:[#allocation8] sm:$0xff] %vm127, %v125
    // Predicated region
    $region34: #{tpu_custom_call.1} parent=1 // pred_check
      _
    $region35: #{tpu_custom_call.1} parent=1 // pred_check_branch
      %130 = sbr.rel (0) target = $region37
    $region36: #{tpu_custom_call.1} parent=1 // pred_region
      %132 = vsyncadd [#allocation4], 0
      %s134 = sshll.u32 [#allocation8], 4
      %s135 = int_to_ptr.vmem [resolvable:$true] %s134
      %s136 = sshll.u32 %s5, 4
      %s137 = int_to_ptr.hbm [resolvable:$true] %s136
      %139 = dma.vmem_to_hbm [thread:$0]  %s135, 128, %s137, [#allocation4]
    $region37: #{tpu_custom_call.1} parent=1 // pred_fallthru
      _
    // Predicated region
    $region38: #{tpu_custom_call.1} parent=1 // pred_check
      _
    $region39: #{tpu_custom_call.1} parent=1 // pred_check_branch
      %141 = sbr.rel (0) target = $region41
    $region40: #{tpu_custom_call.1} parent=1 // pred_region
      %143 = dma.done [#allocation4], 128
    $region41: #{tpu_custom_call.1} parent=1 // pred_fallthru
      _
    %144 = vsyncpa [#allocation3], 1
    %145 = vsyncpa [#allocation6], 1
    %146 = vsyncpa [#allocation4], 1

</llo_original>
